<compile_context>
chip_gen: v7x
topology: tpu7x:2x2x1
jax: 0.10.0
libtpu: 0.0.40
codegen_flags: <defaults>
</compile_context>

<pallas_src>
import jax
import jax.numpy as jnp
from jax.experimental import pallas as pl
from jax.experimental.pallas import tpu as pltpu


# ---------------------------------------------------------------------------
# Materializing copy: single HBM -> HBM DMA (only used when explicitly asked).
# ---------------------------------------------------------------------------

def _dma_copy_kernel(x_hbm_ref, o_hbm_ref):
    # Both refs live in HBM (memory_space=pl.ANY): issue one async copy for the
    # whole array and wait on it.  No VMEM staging, no grid steps.
    def body(sem):
        cp = pltpu.make_async_copy(x_hbm_ref, o_hbm_ref, sem)
        cp.start()
        cp.wait()

    pl.run_scoped(body, pltpu.SemaphoreType.DMA(()))


def pallas_materialize(x: jax.Array) -> jax.Array:
    """Explicit materializing copy of `x` via a single HBM->HBM DMA."""
    nbytes = x.size * jnp.dtype(x.dtype).itemsize
    return pl.pallas_call(
        _dma_copy_kernel,
        out_shape=jax.ShapeDtypeStruct(x.shape, x.dtype),
        in_specs=[pl.BlockSpec(memory_space=pl.ANY)],
        out_specs=pl.BlockSpec(memory_space=pl.ANY),
        compiler_params=pltpu.CompilerParams(has_side_effects=True),
        cost_estimate=pl.CostEstimate(
            flops=0, transcendentals=0, bytes_accessed=2 * int(nbytes)),
    )(x)


# ---------------------------------------------------------------------------
# The Lambda module and the concrete func used in mnist(CNN).py
# ---------------------------------------------------------------------------

class Lambda:
    """JAX equivalent of the PyTorch Lambda(nn.Module): forward(x) = func(x)."""

    def __init__(self, func):
        self.func = func

    def __call__(self, x):
        return self.func(x)


def preprocess(x, materialize: bool = False):
    # PyTorch: x.view(-1, 1, 28, 28).
    # Default (and recommended) path: zero-cost metadata reshape — no kernel.
    # Only when a materialized copy is explicitly requested do we route the
    # data through the single-DMA Pallas kernel above.
    if materialize:
        x = pallas_materialize(x)
    return x.reshape(-1, 1, 28, 28)


# TODO(synk): `Lambda` wraps an *arbitrary* python callable; only the concrete
# func used in mnist(CNN).py (the NCHW preprocess view) is realized here.


if __name__ == "__main__":
    key = jax.random.PRNGKey(0)
    lam = Lambda(preprocess)

    # 1) Default path — tiny batch, pure reshape (no Pallas call, zero cost).
    x_small = jax.random.normal(key, (2, 28 * 28), dtype=jnp.float32)
    out_small = jax.block_until_ready(lam(x_small))
    assert out_small.shape == (2, 1, 28, 28)
    assert out_small.dtype == x_small.dtype
    assert bool(jnp.array_equal(out_small, x_small.reshape(-1, 1, 28, 28)))

    # 2) Explicit materialization path — exercises the single HBM->HBM DMA
    #    Pallas kernel once (small batch; the DMA path has no shape/layout
    #    constraints so the same code covers any batch size and dtype).
    x_batch = jax.random.normal(key, (64, 28 * 28), dtype=jnp.float32)
    out_batch = jax.block_until_ready(preprocess(x_batch, materialize=True))
    assert out_batch.shape == (64, 1, 28, 28)
    assert out_batch.dtype == x_batch.dtype
    assert bool(jnp.array_equal(out_batch, x_batch.reshape(-1, 1, 28, 28)))

    print("KERNEL_OK")
</pallas_src>

<mosaic_0001>
module attributes {stable_mosaic.version = 11 : i64} {
  func.func @_dma_copy_kernel(%arg0: memref<64x784xf32, #tpu.memory_space<any>>, %arg1: memref<64x784xf32, #tpu.memory_space<any>>) attributes {dimension_semantics = [], scalar_prefetch = 0 : i64, scratch_operands = 0 : i64, tpu.core_type = #tpu.core_type<tc>} {
    "tpu.region"() ({
      %0 = tpu.sem_alloc : memref<!tpu.dma_semaphore, #tpu.memory_space<semaphore_mem>>
      tpu.enqueue_dma source(%arg0 : memref<64x784xf32, #tpu.memory_space<any>>) target(%arg1 : memref<64x784xf32, #tpu.memory_space<any>>) target_semaphore(%0 : memref<!tpu.dma_semaphore, #tpu.memory_space<semaphore_mem>>)
      tpu.wait_dma2 semaphore(%0 : memref<!tpu.dma_semaphore, #tpu.memory_space<semaphore_mem>>) src(%arg0 : memref<64x784xf32, #tpu.memory_space<any>>) dst(%arg1 : memref<64x784xf32, #tpu.memory_space<any>>)
      tpu.yield
    }) : () -> ()
    return
  }
}

</mosaic_0001>

<llo_original>
// kernel: tpu_custom_call.1
$region0: #{tpu_custom_call.1}
  #allocation0 [shape = 'u32[]', space=smem, size = 0x4, offset = 0x4, fixed_abs, tag = 'smem constant byte address 0x4 - core index']
  #allocation1 [shape = 'u32[144,128]{1,0:T(1,128)}', space=vmem, size = 0x12000, scoped, tag = 'internal scratch']
  #allocation3 [shape = 's32[]', space=sflag, size = 0x4, offset = 0, fixed_abs, tag = 'sflag constant byte address 0x0 - dummy sync flag']
  #allocation4 [shape = 'u32[0]{0}', space=smem, size = 0, offset = 0, fixed_abs, tag = 'smem constant byte address 0x0 - null']
  %s0 = inlined_call_operand.hbm [shape: f32[64,784], index: 0, kind: input, shape index: {}]
  %s1 = inlined_call_operand.hbm [shape: f32[64,784], index: 1, kind: output, shape index: {}]
  %s2 = sld [smem:[#allocation0]]
  $region3: #{tpu_custom_call.1} parent=0
    _
  %s4 = ssub.s32 1, %s2
  %s5 = scalar_select 0, %s4, %s2
  $region2: #{tpu_custom_call.1} parent=0
    #allocation2 [shape = 's32[1]{0}', space=sflag, size = 0x4, scoped, tag = 'scoped memory for tpu_custom_call.1']
    %s7 = sshll.u32 1, 14
    %s8 = sxor.u32 4294967295, %s7
    %s11 = sshll.u32 3, 24
    %s12 = sxor.u32 4294967295, %s11
    %s13 = sand.u32 0, %s12
    %s15 = sor.u32 %s13, 0
    %18 = dma.general %s0, 7168, %s1, [#allocation2], [#allocation3], [#allocation4], %s15, 0
    %s19 = smul.u32 8, 8
    %s20 = smul.u32 %s19, 7
    %s21 = sshll.u32 %s20, 4
    %22 = dma.done [#allocation2], %s21

</llo_original>
